<compile_context>
chip_gen: v6e
topology: v6e:2x2x1
jax: 0.10.0
libtpu: 0.0.40
codegen_flags: <defaults>
</compile_context>

<pallas_src>
import functools

import jax
import jax.numpy as jnp
from jax import lax
from jax.experimental import pallas as pl
from jax.experimental.pallas import tpu as pltpu

LN_EPS = 1e-5


# --------------------------------------------------------------------------------------
# One-time (cached) hardware / capability queries -- never in the per-call hot path.
# --------------------------------------------------------------------------------------

_VMEM_CAP = None


def _vmem_capacity_bytes():
    global _VMEM_CAP
    if _VMEM_CAP is None:
        cap = 64 * 1024 * 1024  # conservative fallback (v7x-sized)
        try:
            info = pltpu.get_tpu_info()
            c = getattr(info, "vmem_capacity_bytes", None)
            if c:
                cap = int(c)
        except Exception:
            pass
        _VMEM_CAP = cap
    return _VMEM_CAP


_IS_V5E = None


def _is_v5e():
    global _IS_V5E
    if _IS_V5E is None:
        try:
            kind = jax.devices()[0].device_kind.lower()
            _IS_V5E = ("v5e" in kind) or ("v5 lite" in kind) or ("v5litepod" in kind)
        except Exception:
            _IS_V5E = False
    return _IS_V5E


_SINGLE_BUF_CONSTS = None


def _single_buffer_consts_supported():
    """Probe pl.Buffered(1) once on a tiny kernel; cache the decision."""
    global _SINGLE_BUF_CONSTS
    if _SINGLE_BUF_CONSTS is not None:
        return _SINGLE_BUF_CONSTS
    if not hasattr(pl, "Buffered"):
        _SINGLE_BUF_CONSTS = False
        return False

    def probe_kernel(a_ref, c_ref, o_ref):
        o_ref[...] = a_ref[...] + c_ref[...]

    try:
        fn = pl.pallas_call(
            probe_kernel,
            out_shape=jax.ShapeDtypeStruct((16, 128), jnp.float32),
            grid_spec=pltpu.PrefetchScalarGridSpec(
                num_scalar_prefetch=0,
                grid=(2,),
                in_specs=[
                    pl.BlockSpec((8, 128), lambda i: (i, 0)),
                    pl.BlockSpec((8, 128), lambda i: (0, 0),
                                 pipeline_mode=pl.Buffered(1)),
                ],
                out_specs=pl.BlockSpec((8, 128), lambda i: (i, 0)),
            ),
        )
        jax.block_until_ready(fn(jnp.zeros((16, 128), jnp.float32),
                                 jnp.ones((8, 128), jnp.float32)))
        _SINGLE_BUF_CONSTS = True
    except Exception:
        _SINGLE_BUF_CONSTS = False
    return _SINGLE_BUF_CONSTS


# --------------------------------------------------------------------------------------
# Kernel
# --------------------------------------------------------------------------------------

def _downsample_kernel(x_ref, w_ref, b_ref, cs_ref, o_ref, *, use_mxu_stats):
    # x_ref:  (1, tm, C)   raw input rows (channels-last)
    # w_ref:  (C, dim)     gamma-folded pointwise-conv weight (matmul dtype)
    # b_ref:  (1, dim)     folded bias  (beta @ W + conv_b), f32
    # cs_ref: (1, dim)     column sums of the folded weight, f32
    # o_ref:  (1, dim, tm) channel-major output tile
    x = x_ref[0]
    x_mm = x.astype(w_ref.dtype)
    C = x.shape[-1]
    inv_c = jnp.float32(1.0 / C)

    # Pointwise Conv3d == channel matmul on the MXU (f32 accumulation), on RAW x.
    y_raw = jnp.dot(x_mm, w_ref[...], preferred_element_type=jnp.float32)   # (tm, dim)

    if use_mxu_stats:
        # Row sums / sums-of-squares via the MXU instead of XLU lane reductions
        # (v6e/v7x have only 2 XLUs which also carry the output transpose).
        ones_col = jnp.ones((C, 1), dtype=x_mm.dtype)
        sum_x = jnp.dot(x_mm, ones_col, preferred_element_type=jnp.float32)          # (tm, 1)
        sum_sq = jnp.dot(x_mm * x_mm, ones_col, preferred_element_type=jnp.float32)  # (tm, 1)
    else:
        x32 = x.astype(jnp.float32)
        sum_x = jnp.sum(x32, axis=-1, keepdims=True)
        sum_sq = jnp.sum(x32 * x32, axis=-1, keepdims=True)

    # One-pass LayerNorm statistics in f32 (clamped; matches accepted tolerance).
    mean = sum_x * inv_c
    var = jnp.maximum(sum_sq * inv_c - mean * mean, 0.0)
    rstd = lax.rsqrt(var + LN_EPS)                                           # (tm, 1)

    # Folded-LN correction on the small (tm, dim) result:
    #   ((x - mean) * rstd * gamma + beta) @ W + b
    #     == rstd * (x @ W' - mean * colsum(W')) + (beta @ W + b)
    y = (y_raw - mean * cs_ref[...]) * rstd + b_ref[...]                     # (tm, dim) f32

    # Channel-major store: matches torch permute(0,4,1,2,3) + flat reshape layout.
    o_ref[0] = y.T.astype(o_ref.dtype)


# --------------------------------------------------------------------------------------
# Tiling / VMEM planning
# --------------------------------------------------------------------------------------

def _vmem_bytes(tm, C, dim, in_b, w_b, n_const_buf):
    out_b = in_b
    return (2 * tm * C * in_b                              # double-buffered input blocks
            + 2 * tm * dim * out_b                         # double-buffered output blocks
            + n_const_buf * (C * dim * w_b + 8 * dim)      # weight + bias/colsum consts
            + tm * C * w_b                                 # x^2 temporary (stats)
            + 12 * tm * dim)                               # f32 y_raw / y / y.T temporaries


def _select_tile(S, C, dim, in_b, w_b, n_const_buf, budget, B, min_steps=4):
    """Returns (tm, S_eff). S_eff == S means no padding is required."""
    def est(t):
        return _vmem_bytes(t, C, dim, in_b, w_b, n_const_buf)

    if S % 128 != 0:
        if est(S) <= budget:
            return S, S                       # whole row extent in one block, no pad
        # TODO(synk): ragged S too large for one VMEM block falls back to a padded
        # layout (one extra HBM pass for pad + output slice); handle the ragged tail
        # in-kernel if this path ever matters for real shapes.
        t = 128
        while est(t + 128) <= budget:
            t += 128
        return t, -(-S // t) * t

    # S multiple of 128: pick among 128-aligned divisors (no padding, lane-dense stores).
    divisors = [t for t in range(128, S + 1, 128) if S % t == 0 and est(t) <= budget]
    if not divisors:
        # TODO(synk): extreme channel counts (weight alone near the budget) would also
        # need K-tiling of the reduction dimension; not required for realistic dims.
        return 128, S
    tm = max(divisors)
    # Expose enough total grid steps for multi-TensorCore (v7x megacore) scheduling.
    while B * (S // tm) < min_steps:
        smaller = [t for t in divisors if t < tm]
        if not smaller:
            break
        tm = max(smaller)
    return tm, S


# --------------------------------------------------------------------------------------
# Host-side parameter folding (done once, outside the per-call path)
# --------------------------------------------------------------------------------------

def prepare_downsample_params(gamma, beta, conv_w, conv_b, *, mm_dtype=None):
    """Fold the LayerNorm affine into the pointwise conv; fold in f32, cast last."""
    dim = conv_w.shape[0]
    C = conv_w.shape[1]
    if mm_dtype is None:
        mm_dtype = jnp.bfloat16 if conv_w.dtype == jnp.bfloat16 else jnp.float32
    w = conv_w.reshape(dim, C).T.astype(jnp.float32)            # (C, dim)
    w_fold = w * gamma.astype(jnp.float32).reshape(C, 1)        # W' = diag(gamma) @ W
    colsum = jnp.sum(w_fold, axis=0, keepdims=True)             # (1, dim) f32
    b_fold = (beta.astype(jnp.float32).reshape(1, C) @ w
              + conv_b.astype(jnp.float32).reshape(1, dim))     # (1, dim) f32
    return w_fold.astype(mm_dtype), b_fold, colsum


# --------------------------------------------------------------------------------------
# Forward
# --------------------------------------------------------------------------------------

def downsample_forward(x, T, H, W, params):
    """Reproduces DownSample.forward(x, T, H, W) given pre-folded params."""
    w_fold, b_fold, colsum = params
    B, L, dim_in = x.shape
    C, dim = w_fold.shape
    Hh, Wh = H // 2, W // 2
    S = T * Hh * Wh
    assert L * dim_in == S * C, "token count inconsistent with T, H, W"

    in_b = jnp.dtype(x.dtype).itemsize
    w_b = jnp.dtype(w_fold.dtype).itemsize
    n_const_buf = 1 if _single_buffer_consts_supported() else 2

    vmem_cap = _vmem_capacity_bytes()
    budget = int(vmem_cap * 0.70)            # ~90 MiB on 128 MiB chips, ~45 MiB on v7x
    tm, S_eff = _select_tile(S, C, dim, in_b, w_b, n_const_buf, budget, B)

    # torch reshape(B, T, H//2, W//2, 4*dim) is a flat channel regroup.
    x_r = x.reshape(B, S, C)
    if S_eff != S:
        x_r = jnp.pad(x_r, ((0, 0), (0, S_eff - S), (0, 0)))

    est = _vmem_bytes(tm, C, dim, in_b, w_b, n_const_buf)
    vmem_limit = int(min(vmem_cap * 85 // 100,
                         max(32 * 1024 * 1024, est * 5 // 4)))

    # f32 models on v5e keep the lane reductions on its 3 XLUs (f32 MXU passes are
    # expensive there); everywhere else the statistics ride the idle MXU.
    use_mxu_stats = not (_is_v5e() and w_fold.dtype == jnp.float32)

    def const_spec(shape):
        idx = lambda b, s: (0,) * len(shape)
        if n_const_buf == 1:
            return pl.BlockSpec(shape, idx, pipeline_mode=pl.Buffered(1))
        return pl.BlockSpec(shape, idx)

    out_cm = pl.pallas_call(
        functools.partial(_downsample_kernel, use_mxu_stats=use_mxu_stats),
        out_shape=jax.ShapeDtypeStruct((B, dim, S_eff), x.dtype),
        grid_spec=pltpu.PrefetchScalarGridSpec(
            num_scalar_prefetch=0,
            grid=(B, S_eff // tm),
            in_specs=[
                pl.BlockSpec((1, tm, C), lambda b, s: (b, s, 0)),
                const_spec((C, dim)),      # folded conv weight
                const_spec((1, dim)),      # folded bias
                const_spec((1, dim)),      # folded-weight column sums
            ],
            out_specs=pl.BlockSpec((1, dim, tm), lambda b, s: (b, 0, s)),
        ),
        compiler_params=pltpu.CompilerParams(
            dimension_semantics=("parallel", "parallel"),
            vmem_limit_bytes=vmem_limit),
    )(x_r, w_fold, b_fold, colsum)

    if S_eff != S:
        out_cm = out_cm[:, :, :S]
    # torch: reshape(B, -1, dim) on channel-major data -> pure flat reshape here.
    return out_cm.reshape(B, S, dim)


class DownSample:
    """JAX/Pallas counterpart of the PyTorch DownSample module."""

    def __init__(self, gamma, beta, conv_w, conv_b):
        # All weight reshapes / folds / casts happen once here, not per forward call.
        self.params = prepare_downsample_params(gamma, beta, conv_w, conv_b)

    def __call__(self, x, T, H, W):
        return downsample_forward(x, T, H, W, self.params)


# --------------------------------------------------------------------------------------
# Reference + self-test
# --------------------------------------------------------------------------------------

def _reference(x, T, H, W, gamma, beta, conv_w, conv_b):
    B, _, dim = x.shape
    C = 4 * dim
    S = T * (H // 2) * (W // 2)
    xr = x.reshape(B, S, C).astype(jnp.float32)
    mean = jnp.mean(xr, axis=-1, keepdims=True)
    var = jnp.mean((xr - mean) ** 2, axis=-1, keepdims=True)
    normed = ((xr - mean) / jnp.sqrt(var + LN_EPS)
              * gamma.astype(jnp.float32) + beta.astype(jnp.float32))
    w_t = conv_w.reshape(dim, C).astype(jnp.float32).T
    y = normed @ w_t + conv_b.astype(jnp.float32)   # (B, S, dim) token-major
    y_cf = jnp.transpose(y, (0, 2, 1))              # (B, dim, S) conv-output layout
    return y_cf.reshape(B, S, dim)                  # flat reshape, exactly like torch


if __name__ == "__main__":
    dim = 32
    B, T, H, W = 2, 2, 8, 8                   # x: [B, T*H*W, dim] = [2, 128, 32]
    C = 4 * dim

    key = jax.random.PRNGKey(0)
    kx, kg, kb, kw, kc = jax.random.split(key, 5)
    x = jax.random.normal(kx, (B, T * H * W, dim), dtype=jnp.float32)
    gamma = 1.0 + 0.1 * jax.random.normal(kg, (C,), dtype=jnp.float32)
    beta = 0.1 * jax.random.normal(kb, (C,), dtype=jnp.float32)
    conv_w = jax.random.normal(kw, (dim, C, 1, 1, 1), dtype=jnp.float32) * (1.0 / C) ** 0.5
    conv_b = 0.1 * jax.random.normal(kc, (dim,), dtype=jnp.float32)

    ref = _reference(x, T, H, W, gamma, beta, conv_w, conv_b)

    # f32 model (f32 MXU matmul + f32 statistics).
    mod_f32 = DownSample(gamma, beta, conv_w, conv_b)
    out = jax.block_until_ready(mod_f32(x, T, H, W))
    assert out.shape == (B, T * (H // 2) * (W // 2), dim), out.shape
    assert jnp.allclose(out.astype(jnp.float32), ref, atol=5e-4, rtol=5e-4), (
        float(jnp.max(jnp.abs(out.astype(jnp.float32) - ref))))

    # bf16 model (bf16 MXU matmul, f32 statistics / accumulation / weight folding).
    bf = jnp.bfloat16
    mod_bf16 = DownSample(gamma.astype(bf), beta.astype(bf),
                          conv_w.astype(bf), conv_b.astype(bf))
    out_bf16 = jax.block_until_ready(mod_bf16(x.astype(bf), T, H, W))
    assert out_bf16.shape == out.shape
    assert jnp.allclose(out_bf16.astype(jnp.float32), ref, atol=1.5e-1, rtol=1.5e-1)

    print("KERNEL_OK")
</pallas_src>

<mosaic_0001>
module attributes {stable_mosaic.version = 11 : i64} {
  func.func @probe_kernel(%arg0: i32, %arg1: memref<8x128xf32, #tpu.memory_space<vmem>>, %arg2: memref<8x128xf32, #tpu.memory_space<vmem>>, %arg3: memref<8x128xf32, #tpu.memory_space<vmem>>) attributes {dimension_semantics = [#tpu.dimension_semantics<arbitrary>], iteration_bounds = array<i64: 2>, scalar_prefetch = 0 : i64, scratch_operands = 0 : i64, tpu.core_type = #tpu.core_type<tc>, window_params = [{transform_indices = @transform_0, window_bounds = array<i64: 8, 128>}, {pipeline_mode = #tpu.pipeline_mode<synchronous>, transform_indices = @transform_1, window_bounds = array<i64: 8, 128>}, {transform_indices = @transform_2, window_bounds = array<i64: 8, 128>}]} {
    %c0 = arith.constant 0 : index
    %c0_0 = arith.constant 0 : index
    %0 = vector.load %arg1[%c0, %c0_0] : memref<8x128xf32, #tpu.memory_space<vmem>>, vector<8x128xf32>
    %c0_1 = arith.constant 0 : index
    %c0_2 = arith.constant 0 : index
    %1 = vector.load %arg2[%c0_1, %c0_2] : memref<8x128xf32, #tpu.memory_space<vmem>>, vector<8x128xf32>
    %2 = arith.addf %0, %1 : vector<8x128xf32>
    %c0_3 = arith.constant 0 : index
    %c0_4 = arith.constant 0 : index
    %3 = vector.load %arg3[%c0_3, %c0_4] : memref<8x128xf32, #tpu.memory_space<vmem>>, vector<8x128xf32>
    tpu.vector_store %arg3[%c0_3, %c0_4], %2 {strides = array<i32>} : memref<8x128xf32, #tpu.memory_space<vmem>>, vector<8x128xf32>,
    return
  }
  func.func @transform_0(%arg0: i32) -> (i32, i32) {
    %c0_i32 = arith.constant 0 : i32
    %c0_i32_0 = arith.constant 0 : i32
    return %arg0, %c0_i32 : i32, i32
  }
  func.func @transform_1(%arg0: i32) -> (i32, i32) {
    %c0_i32 = arith.constant 0 : i32
    %c0_i32_0 = arith.constant 0 : i32
    %c0_i32_1 = arith.constant 0 : i32
    return %c0_i32, %c0_i32_0 : i32, i32
  }
  func.func @transform_2(%arg0: i32) -> (i32, i32) {
    %c0_i32 = arith.constant 0 : i32
    %c0_i32_0 = arith.constant 0 : i32
    return %arg0, %c0_i32 : i32, i32
  }
}

module attributes {stable_mosaic.version = 11 : i64} {
  func.func @_downsample_kernel(%arg0: i32, %arg1: i32, %arg2: memref<1x32x128xf32, #tpu.memory_space<vmem>>, %arg3: memref<128x32xf32, #tpu.memory_space<vmem>>, %arg4: memref<1x32xf32, #tpu.memory_space<vmem>>, %arg5: memref<1x32xf32, #tpu.memory_space<vmem>>, %arg6: memref<1x32x32xf32, #tpu.memory_space<vmem>>) attributes {dimension_semantics = [#tpu.dimension_semantics<parallel>, #tpu.dimension_semantics<parallel>], iteration_bounds = array<i64: 2, 1>, scalar_prefetch = 0 : i64, scratch_operands = 0 : i64, tpu.core_type = #tpu.core_type<tc>, window_params = [{transform_indices = @transform_0, window_bounds = array<i64: 1, 32, 128>}, {pipeline_mode = #tpu.pipeline_mode<synchronous>, transform_indices = @transform_1, window_bounds = array<i64: 128, 32>}, {pipeline_mode = #tpu.pipeline_mode<synchronous>, transform_indices = @transform_2, window_bounds = array<i64: 1, 32>}, {pipeline_mode = #tpu.pipeline_mode<synchronous>, transform_indices = @transform_3, window_bounds = array<i64: 1, 32>}, {transform_indices = @transform_4, window_bounds = array<i64: 1, 32, 32>}]} {
    %c0 = arith.constant 0 : index
    %c0_0 = arith.constant 0 : index
    %c0_1 = arith.constant 0 : index
    %0 = vector.load %arg2[%c0, %c0_0, %c0_1] : memref<1x32x128xf32, #tpu.memory_space<vmem>>, vector<1x32x128xf32>
    %1 = vector.shape_cast %0 : vector<1x32x128xf32> to vector<32x128xf32>
    %c0_2 = arith.constant 0 : index
    %c0_3 = arith.constant 0 : index
    %2 = vector.load %arg3[%c0_2, %c0_3] : memref<128x32xf32, #tpu.memory_space<vmem>>, vector<128x32xf32>
    %cst = arith.constant dense<0.000000e+00> : vector<32x32xf32>
    %3 = tpu.matmul %1, %2, %cst {dimension_numbers = #tpu.dot_dimension_numbers<[1], [0], [0], [1], [0, 0, 1, 1], [], []>} : vector<32x128xf32>, vector<128x32xf32>, vector<32x32xf32> -> vector<32x32xf32>
    %cst_4 = arith.constant 1.000000e+00 : f32
    %4 = vector.broadcast %cst_4 : f32 to vector<128x1xf32>
    %cst_5 = arith.constant dense<0.000000e+00> : vector<32x1xf32>
    %5 = tpu.matmul %1, %4, %cst_5 {dimension_numbers = #tpu.dot_dimension_numbers<[1], [0], [0], [1], [0, 0, 1, 1], [], []>} : vector<32x128xf32>, vector<128x1xf32>, vector<32x1xf32> -> vector<32x1xf32>
    %6 = arith.mulf %1, %1 : vector<32x128xf32>
    %cst_6 = arith.constant dense<0.000000e+00> : vector<32x1xf32>
    %7 = tpu.matmul %6, %4, %cst_6 {dimension_numbers = #tpu.dot_dimension_numbers<[1], [0], [0], [1], [0, 0, 1, 1], [], []>} : vector<32x128xf32>, vector<128x1xf32>, vector<32x1xf32> -> vector<32x1xf32>
    %cst_7 = arith.constant 7.812500e-03 : f32
    %8 = vector.broadcast %cst_7 : f32 to vector<32x1xf32>
    %9 = arith.mulf %5, %8 : vector<32x1xf32>
    %cst_8 = arith.constant 7.812500e-03 : f32
    %10 = vector.broadcast %cst_8 : f32 to vector<32x1xf32>
    %11 = arith.mulf %7, %10 : vector<32x1xf32>
    %12 = arith.mulf %9, %9 : vector<32x1xf32>
    %13 = arith.subf %11, %12 : vector<32x1xf32>
    %cst_9 = arith.constant 0.000000e+00 : f32
    %14 = vector.broadcast %cst_9 : f32 to vector<32x1xf32>
    %15 = arith.maximumf %13, %14 : vector<32x1xf32>
    %cst_10 = arith.constant 9.99999974E-6 : f32
    %16 = vector.broadcast %cst_10 : f32 to vector<32x1xf32>
    %17 = arith.addf %15, %16 : vector<32x1xf32>
    %18 = math.rsqrt %17 : vector<32x1xf32>
    %c0_11 = arith.constant 0 : index
    %c0_12 = arith.constant 0 : index
    %19 = vector.load %arg5[%c0_11, %c0_12] : memref<1x32xf32, #tpu.memory_space<vmem>>, vector<1x32xf32>
    %20 = vector.broadcast %9 : vector<32x1xf32> to vector<32x32xf32>
    %21 = vector.broadcast %19 : vector<1x32xf32> to vector<32x32xf32>
    %22 = arith.mulf %20, %21 : vector<32x32xf32>
    %23 = arith.subf %3, %22 : vector<32x32xf32>
    %24 = vector.broadcast %18 : vector<32x1xf32> to vector<32x32xf32>
    %25 = arith.mulf %23, %24 : vector<32x32xf32>
    %c0_13 = arith.constant 0 : index
    %c0_14 = arith.constant 0 : index
    %26 = vector.load %arg4[%c0_13, %c0_14] : memref<1x32xf32, #tpu.memory_space<vmem>>, vector<1x32xf32>
    %27 = vector.broadcast %26 : vector<1x32xf32> to vector<32x32xf32>
    %28 = arith.addf %25, %27 : vector<32x32xf32>
    %29 = tpu.transpose %28, [1, 0] : vector<32x32xf32> -> vector<32x32xf32>
    %c0_15 = arith.constant 0 : index
    %c0_16 = arith.constant 0 : index
    %c0_17 = arith.constant 0 : index
    %30 = vector.load %arg6[%c0_15, %c0_16, %c0_17] : memref<1x32x32xf32, #tpu.memory_space<vmem>>, vector<1x32x32xf32>
    %31 = vector.shape_cast %30 : vector<1x32x32xf32> to vector<32x32xf32>
    %32 = vector.shape_cast %29 : vector<32x32xf32> to vector<1x32x32xf32>
    tpu.vector_store %arg6[%c0_15, %c0_16, %c0_17], %32 {strides = array<i32>} : memref<1x32x32xf32, #tpu.memory_space<vmem>>, vector<1x32x32xf32>,
    return
  }
  func.func @transform_0(%arg0: i32, %arg1: i32) -> (i32, i32, i32) {
    %c0_i32 = arith.constant 0 : i32
    %c0_i32_0 = arith.constant 0 : i32
    return %arg0, %arg1, %c0_i32 : i32, i32, i32
  }
  func.func @transform_1(%arg0: i32, %arg1: i32) -> (i32, i32) {
    %c0_i32 = arith.constant 0 : i32
    %c0_i32_0 = arith.constant 0 : i32
    %c0_i32_1 = arith.constant 0 : i32
    return %c0_i32, %c0_i32_0 : i32, i32
  }
  func.func @transform_2(%arg0: i32, %arg1: i32) -> (i32, i32) {
    %c0_i32 = arith.constant 0 : i32
    %c0_i32_0 = arith.constant 0 : i32
    %c0_i32_1 = arith.constant 0 : i32
    return %c0_i32, %c0_i32_0 : i32, i32
  }
  func.func @transform_3(%arg0: i32, %arg1: i32) -> (i32, i32) {
    %c0_i32 = arith.constant 0 : i32
    %c0_i32_0 = arith.constant 0 : i32
    %c0_i32_1 = arith.constant 0 : i32
    return %c0_i32, %c0_i32_0 : i32, i32
  }
  func.func @transform_4(%arg0: i32, %arg1: i32) -> (i32, i32, i32) {
    %c0_i32 = arith.constant 0 : i32
    %c0_i32_0 = arith.constant 0 : i32
    return %arg0, %c0_i32, %arg1 : i32, i32, i32
  }
}

</mosaic_0001>

<llo_original>
// kernel: tpu_custom_call.1
$region0: #{tpu_custom_call.1}
  #allocation0 [shape = 'u32[]', space=smem, size = 0x4, offset = 0x4, fixed_abs, tag = 'smem constant byte address 0x4 - core index']
  #allocation1 [shape = 'u32[144,128]{1,0:T(1,128)}', space=vmem, size = 0x12000, scoped, tag = 'internal scratch']
  %s0 = inlined_call_operand.hbm [shape: f32[16,128], index: 0, kind: input, shape index: {}]
  %s1 = inlined_call_operand.hbm [shape: f32[8,128], index: 1, kind: input, shape index: {}]
  %s2 = inlined_call_operand.hbm [shape: f32[16,128], index: 2, kind: output, shape index: {}]
  %s3 = sld [smem:[#allocation0]]
  $region49: #{tpu_custom_call.1} parent=0
    _
  %s5 = ssub.s32 1, %s3
  %s6 = scalar_select 0, %s5, %s3
  $region1: #{tpu_custom_call.1} parent=0
    #allocation2 [shape = 'u8[8192]{0}', space=vmem, size = 0x2000, scoped, tag = 'input window, operand 0']
    #allocation3 [shape = 's32[2]{0}', space=sflag, size = 0x8, scoped, tag = 'scoped memory for tpu_custom_call.1']
    #allocation4 [shape = 's32[2]{0}', space=sflag, size = 0x8, scoped, tag = 'scoped memory for tpu_custom_call.1']
    #allocation5 [shape = 'u8[4096]{0}', space=vmem, size = 0x1000, scoped, tag = 'input window, operand 1, single buffered']
    #allocation6 [shape = 's32[1]{0}', space=sflag, size = 0x4, scoped, tag = 'scoped memory for tpu_custom_call.1']
    #allocation7 [shape = 'u8[8192]{0}', space=vmem, size = 0x2000, scoped, tag = 'output window, operand 0']
    %7 = vsyncpa [#allocation3], 0
    %s8 = scalar_lea.sflag [#allocation3], 1
    %9 = vsyncpa %s8, 0
    %10 = vsyncpa [#allocation6], 0
    %11 = vsyncpa [#allocation4], 0
    %s12 = scalar_lea.sflag [#allocation4], 1
    %13 = vsyncpa %s12, 0
    loop: start=0, step=1, limit=4
    $region2: #{tpu_custom_call.1} parent=1 // loop_pre_header
      _
    $region3: #{tpu_custom_call.1} parent=1 // loop_header
      %s15 = sphi 0, %s19
      %p16 = scmp.ge.s32.totalorder %s15, 4
      %s25 = sphi 0, %s27
      %s28 = sphi 0, %s25
      %s29 = sphi 0, %s28
      %s45 = sphi 0, %s29
      %s49 = sphi 0, %s49
      %s51 = sphi 0, %s49
      %s52 = sphi 0, %s51
      %s66 = sphi 0, %s52
      %s72 = sphi 0, %s74
      %s75 = sphi 0, %s72
      %s76 = sphi 0, %s75
      %s92 = sphi 0, %s76
    $region4: #{tpu_custom_call.1} parent=1 // loop_header_branch
      %18 = sbr.rel (%p16) target = $region8
    $region5: #{tpu_custom_call.1} parent=1 // loop_body
      %s20 = ssub.s32 %s15, 1
      %s21 = ssub.s32 %s15, 2
      %s22 = sadd.s32 %s15, 1
      %s23 = ssub.s32 %s15, %s22
      %p24 = scmp.eq.s32.totalorder %s23, 0
      %s26 = sadd.s32 %s25, 1
      %s27 = scalar_select %p24, %s25, %s26
      %p30 = pneg %p24
      %p31 = scmp.eq.s32.totalorder %s15, 1
      %p32 = por %p30, %p31
      %p33 = scmp.ne.s32.totalorder %s25, %s28
      %p34 = scmp.eq.s32.totalorder %s15, 0
      %p35 = por %p33, %p34
      %p36 = scmp.ne.s32.totalorder %s25, %s28
      %p37 = scmp.eq.s32.totalorder %s20, 1
      %p38 = por %p36, %p37
      %p39 = scmp.ne.s32.totalorder %s28, %s29
      %p40 = scmp.eq.s32.totalorder %s20, 0
      %p41 = por %p39, %p40
      %p42 = scmp.ne.s32.totalorder %s28, %s29
      %p43 = scmp.eq.s32.totalorder %s21, 1
      %p44 = por %p42, %p43
      %p46 = scmp.ne.s32.totalorder %s29, %s45
      %p47 = scmp.eq.s32.totalorder %s21, 0
      %p48 = por %p46, %p47
      %s50 = sadd.s32 %s49, 1
      %p53 = scmp.eq.s32.totalorder %s15, 1
      %p54 = scmp.ne.s32.totalorder %s49, %s51
      %p55 = scmp.eq.s32.totalorder %s15, 0
      %p56 = por %p54, %p55
      %p57 = scmp.ne.s32.totalorder %s49, %s51
      %p58 = scmp.eq.s32.totalorder %s20, 1
      %p59 = por %p57, %p58
      %p60 = scmp.ne.s32.totalorder %s51, %s52
      %p61 = scmp.eq.s32.totalorder %s20, 0
      %p62 = por %p60, %p61
      %p63 = scmp.ne.s32.totalorder %s51, %s52
      %p64 = scmp.eq.s32.totalorder %s21, 1
      %p65 = por %p63, %p64
      %p67 = scmp.ne.s32.totalorder %s52, %s66
      %p68 = scmp.eq.s32.totalorder %s21, 0
      %p69 = por %p67, %p68
      %s70 = ssub.s32 %s15, %s22
      %p71 = scmp.eq.s32.totalorder %s70, 0
      %s73 = sadd.s32 %s72, 1
      %s74 = scalar_select %p71, %s72, %s73
      %p77 = pneg %p71
      %p78 = scmp.eq.s32.totalorder %s15, 1
      %p79 = por %p77, %p78
      %p80 = scmp.ne.s32.totalorder %s72, %s75
      %p81 = scmp.eq.s32.totalorder %s15, 0
      %p82 = por %p80, %p81
      %p83 = scmp.ne.s32.totalorder %s72, %s75
      %p84 = scmp.eq.s32.totalorder %s20, 1
      %p85 = por %p83, %p84
      %p86 = scmp.ne.s32.totalorder %s75, %s76
      %p87 = scmp.eq.s32.totalorder %s20, 0
      %p88 = por %p86, %p87
      %p89 = scmp.ne.s32.totalorder %s75, %s76
      %p90 = scmp.eq.s32.totalorder %s21, 1
      %p91 = por %p89, %p90
      %p93 = scmp.ne.s32.totalorder %s76, %s92
      %p94 = scmp.eq.s32.totalorder %s21, 0
      %p95 = por %p93, %p94
      %p96 = scmp.le.s32.totalorder 1, %s15
      %p97 = scmp.lt.s32.totalorder %s15, 3
      %p98 = pnand %p96, %p97
      %p99 = pneg %p98
      // Predicated region
      $region9: #{tpu_custom_call.1} parent=5 // pred_check
        _
      $region10: #{tpu_custom_call.1} parent=5 // pred_check_branch
        %101 = sbr.rel (%p98) target = $region12
      $region11: #{tpu_custom_call.1} parent=5 // pred_region
        %s102 = ssub.s32 %s15, 1
        // Predicated region
        $region13: #{tpu_custom_call.1} parent=11 // pred_check
          %p103 = pneg %p62
        $region14: #{tpu_custom_call.1} parent=11 // pred_check_branch
          %105 = sbr.rel (%p103) target = $region16
        $region15: #{tpu_custom_call.1} parent=11 // pred_region
          %s107 = ssub.s32 128, 128
          %108 = vsyncadd [#allocation6], %s107
          %s110 = sshll.u32 [#allocation5], 4
          %s111 = int_to_ptr.vmem [resolvable:$true] %s110
          %113 = dma.hbm_to_vmem [thread:$0]  %s1, 128, %s111, [#allocation6]
        $region16: #{tpu_custom_call.1} parent=11 // pred_fallthru
          _
      $region12: #{tpu_custom_call.1} parent=5 // pred_fallthru
        _
      %p114 = scmp.lt.s32.totalorder %s15, 2
      // Predicated region
      $region17: #{tpu_custom_call.1} parent=5 // pred_check
        %p115 = pneg %p114
      $region18: #{tpu_custom_call.1} parent=5 // pred_check_branch
        %117 = sbr.rel (%p115) target = $region20
      $region19: #{tpu_custom_call.1} parent=5 // pred_region
        // Predicated region
        $region21: #{tpu_custom_call.1} parent=19 // pred_check
          %p118 = pneg %p35
        $region22: #{tpu_custom_call.1} parent=19 // pred_check_branch
          %120 = sbr.rel (%p118) target = $region24
        $region23: #{tpu_custom_call.1} parent=19 // pred_region
          %s121 = sand.u32 %s25, 1
          %s122 = scalar_lea.sflag [#allocation3], %s121
          %s123 = sand.u32 %s25, 1
          %s124 = smul.addr %s123, 8
          %s125 = scalar_lea.vmem [#allocation2], %s124
          %s127 = ssub.s32 128, 128
          %128 = vsyncadd %s122, %s127
          %s129 = smul.addr %s15, 128
          %s130 = scalar_lea.hbm %s0, %s129
          %s132 = sshll.u32 %s125, 4
          %s133 = int_to_ptr.vmem [resolvable:$true] %s132
          %135 = dma.hbm_to_vmem [thread:$0]  %s130, 128, %s133, %s122
        $region24: #{tpu_custom_call.1} parent=19 // pred_fallthru
          _
      $region20: #{tpu_custom_call.1} parent=5 // pred_fallthru
        _
      %p136 = scmp.le.s32.totalorder 1, %s15
      %p137 = scmp.lt.s32.totalorder %s15, 3
      %p138 = pnand %p136, %p137
      %p139 = pneg %p138
      // Predicated region
      $region25: #{tpu_custom_call.1} parent=5 // pred_check
        _
      $region26: #{tpu_custom_call.1} parent=5 // pred_check_branch
        %141 = sbr.rel (%p138) target = $region28
      $region27: #{tpu_custom_call.1} parent=5 // pred_region
        %s142 = ssub.s32 %s15, 1
        %s143 = sand.u32 %s28, 1
        %s144 = scalar_lea.sflag [#allocation3], %s143
        %s145 = sand.u32 %s28, 1
        %s146 = smul.addr %s145, 8
        %s147 = scalar_lea.vmem [#allocation2], %s146
        // Predicated region
        $region29: #{tpu_custom_call.1} parent=27 // pred_check
          %p148 = pneg %p41
        $region30: #{tpu_custom_call.1} parent=27 // pred_check_branch
          %150 = sbr.rel (%p148) target = $region32
        $region31: #{tpu_custom_call.1} parent=27 // pred_region
          %151 = dma.done %s144, 128
        $region32: #{tpu_custom_call.1} parent=27 // pred_fallthru
          _
        // Predicated region
        $region33: #{tpu_custom_call.1} parent=27 // pred_check
          %p152 = pneg %p62
        $region34: #{tpu_custom_call.1} parent=27 // pred_check_branch
          %154 = sbr.rel (%p152) target = $region36
        $region35: #{tpu_custom_call.1} parent=27 // pred_region
          %155 = dma.done [#allocation6], 128
        $region36: #{tpu_custom_call.1} parent=27 // pred_fallthru
          _
        %s156 = sand.u32 %s28, 1
        %s157 = scalar_lea.sflag [#allocation3], %s156
        %s158 = sand.u32 %s28, 1
        %s159 = smul.addr %s158, 8
        %s160 = scalar_lea.vmem [#allocation2], %s159
        %p161 = pneg %p41
        %p162 = pneg %p38
        %p163 = pneg %p62
        %p164 = pneg %p59
        %p165 = pneg %p88
        %p166 = pneg %p85
        %s167 = sand.u32 %s75, 1
        %s168 = scalar_lea.sflag [#allocation4], %s167
        %s169 = sand.u32 %s75, 1
        %s170 = smul.addr %s169, 8
        %s171 = scalar_lea.vmem [#allocation7], %s170
        %v172 = vld [vmem:[%s147] sm:$0xff]
        %v173 = vld [vmem:[#allocation5] sm:$0xff]
        %v174 = vadd.f32 %v172, %v173
        %175 = vst [vmem:[%s171] sm:$0xff] %v174
        %s176 = sand.u32 %s75, 1
        %s177 = scalar_lea.sflag [#allocation4], %s176
        %s178 = sand.u32 %s75, 1
        %s179 = smul.addr %s178, 8
        %s180 = scalar_lea.vmem [#allocation7], %s179
        // Predicated region
        $region37: #{tpu_custom_call.1} parent=27 // pred_check
          %p181 = pneg %p85
        $region38: #{tpu_custom_call.1} parent=27 // pred_check_branch
          %183 = sbr.rel (%p181) target = $region40
        $region39: #{tpu_custom_call.1} parent=27 // pred_region
          %s185 = ssub.s32 128, 128
          %186 = vsyncadd %s177, %s185
          %s187 = smul.addr %s20, 128
          %s188 = scalar_lea.hbm %s2, %s187
          %s190 = sshll.u32 %s180, 4
          %s191 = int_to_ptr.vmem [resolvable:$true] %s190
          %193 = dma.vmem_to_hbm [thread:$0]  %s191, 128, %s188, %s177
        $region40: #{tpu_custom_call.1} parent=27 // pred_fallthru
          _
      $region28: #{tpu_custom_call.1} parent=5 // pred_fallthru
        _
      %p194 = scmp.le.s32.totalorder 2, %s15
      // Predicated region
      $region41: #{tpu_custom_call.1} parent=5 // pred_check
        %p195 = pneg %p194
      $region42: #{tpu_custom_call.1} parent=5 // pred_check_branch
        %197 = sbr.rel (%p195) target = $region44
      $region43: #{tpu_custom_call.1} parent=5 // pred_region
        %s198 = ssub.s32 %s15, 2
        // Predicated region
        $region45: #{tpu_custom_call.1} parent=43 // pred_check
          %p199 = pneg %p91
        $region46: #{tpu_custom_call.1} parent=43 // pred_check_branch
          %201 = sbr.rel (%p199) target = $region48
        $region47: #{tpu_custom_call.1} parent=43 // pred_region
          %s202 = sand.u32 %s76, 1
          %s203 = scalar_lea.sflag [#allocation4], %s202
          %s204 = sand.u32 %s76, 1
          %s205 = smul.addr %s204, 8
          %s206 = scalar_lea.vmem [#allocation7], %s205
          %207 = dma.done %s203, 128
        $region48: #{tpu_custom_call.1} parent=43 // pred_fallthru
          _
      $region44: #{tpu_custom_call.1} parent=5 // pred_fallthru
        _
    $region6: #{tpu_custom_call.1} parent=1 // loop_footer
      %s19 = sadd.s32 1, %s15
    $region7: #{tpu_custom_call.1} parent=1 // loop_footer_branch
      %14 = sbr.rel target = $region3
    $region8: #{tpu_custom_call.1} parent=1 // loop_exit
      _
    %208 = vsyncpa [#allocation3], 1
    %s209 = scalar_lea.sflag [#allocation3], 1
    %210 = vsyncpa %s209, 1
    %211 = vsyncpa [#allocation6], 1
    %212 = vsyncpa [#allocation4], 1
    %s213 = scalar_lea.sflag [#allocation4], 1
    %214 = vsyncpa %s213, 1

// kernel: tpu_custom_call.1
$region0: #{tpu_custom_call.1}
  #allocation0 [shape = 'u32[]', space=smem, size = 0x4, offset = 0x4, fixed_abs, tag = 'smem constant byte address 0x4 - core index']
  #allocation1 [shape = 'u32[144,128]{1,0:T(1,128)}', space=vmem, size = 0x12000, scoped, tag = 'internal scratch']
  %s0 = inlined_call_operand.vmem [shape: f32[2,32,128], index: 0, kind: input, shape index: {}]
  %s1 = inlined_call_operand.vmem [shape: f32[128,32], index: 1, kind: input, shape index: {}]
  %s2 = inlined_call_operand.vmem [shape: f32[1,32], index: 2, kind: input, shape index: {}]
  %s3 = inlined_call_operand.vmem [shape: f32[1,32], index: 3, kind: input, shape index: {}]
  %s4 = inlined_call_operand.hbm [shape: f32[2,32,32], index: 4, kind: output, shape index: {}]
  %s5 = sld [smem:[#allocation0]]
  $region49: #{tpu_custom_call.1} parent=0
    _
  %s7 = ssub.s32 1, %s5
  %s8 = scalar_select 0, %s7, %s5
  $region1: #{tpu_custom_call.1} parent=0
    #allocation2 [shape = 'u8[32768]{0}', space=vmem, size = 0x8000, scoped, tag = 'output window, operand 0']
    #allocation3 [shape = 's32[2]{0}', space=sflag, size = 0x8, scoped, tag = 'scoped memory for tpu_custom_call.1']
    %9 = vsyncpa [#allocation3], 0
    %s10 = scalar_lea.sflag [#allocation3], 1
    %11 = vsyncpa %s10, 0
    loop: start=0, step=1, limit=4
    $region2: #{tpu_custom_call.1} parent=1 // loop_pre_header
      _
    $region3: #{tpu_custom_call.1} parent=1 // loop_header
      %s13 = sphi 0, %s17
      %p14 = scmp.ge.s32.totalorder %s13, 4
      %s20 = sphi 0, %s32
      %s21 = sphi 0, %s28
      %s22 = sphi 0, %s20
      %s23 = sphi 0, %s21
      %s24 = sphi 0, %s22
      %s25 = sphi 0, %s23
      %s37 = sphi 0, %s39
      %s40 = sphi 0, %s37
      %s41 = sphi 0, %s40
      %s57 = sphi 0, %s41
      %s61 = sphi 0, %s61
      %s63 = sphi 0, %s61
      %s64 = sphi 0, %s63
      %s78 = sphi 0, %s64
      %s82 = sphi 0, %s82
      %s84 = sphi 0, %s82
      %s85 = sphi 0, %s84
      %s99 = sphi 0, %s85
      %s103 = sphi 0, %s103
      %s105 = sphi 0, %s103
      %s106 = sphi 0, %s105
      %s120 = sphi 0, %s106
      %s128 = sphi 0, %s130
      %s131 = sphi 0, %s128
      %s132 = sphi 0, %s131
      %s148 = sphi 0, %s132
    $region4: #{tpu_custom_call.1} parent=1 // loop_header_branch
      %16 = sbr.rel (%p14) target = $region8
    $region5: #{tpu_custom_call.1} parent=1 // loop_body
      %s18 = ssub.s32 %s13, 1
      %s19 = ssub.s32 %s13, 2
      %s26 = sadd.s32 1, %s21
      %p27 = scmp.ge.s32.totalorder %s26, 1
      %s28 = scalar_select %p27, 0, %s26
      %s29 = sadd.s32 1, %s20
      %s30 = scalar_select %p27, %s29, %s20
      %p31 = scmp.ge.s32.totalorder %s30, 2
      %s32 = scalar_select %p31, 0, %s30
      %s33 = ssub.s32 %s20, %s32
      %s34 = ssub.s32 %s21, %s28
      %s35 = sor.u32 %s33, %s34
      %p36 = scmp.eq.s32.totalorder %s35, 0
      %s38 = sadd.s32 %s37, 1
      %s39 = scalar_select %p36, %s37, %s38
      %p42 = pneg %p36
      %p43 = scmp.eq.s32.totalorder %s13, 1
      %p44 = por %p42, %p43
      %p45 = scmp.ne.s32.totalorder %s37, %s40
      %p46 = scmp.eq.s32.totalorder %s13, 0
      %p47 = por %p45, %p46
      %p48 = scmp.ne.s32.totalorder %s37, %s40
      %p49 = scmp.eq.s32.totalorder %s18, 1
      %p50 = por %p48, %p49
      %p51 = scmp.ne.s32.totalorder %s40, %s41
      %p52 = scmp.eq.s32.totalorder %s18, 0
      %p53 = por %p51, %p52
      %p54 = scmp.ne.s32.totalorder %s40, %s41
      %p55 = scmp.eq.s32.totalorder %s19, 1
      %p56 = por %p54, %p55
      %p58 = scmp.ne.s32.totalorder %s41, %s57
      %p59 = scmp.eq.s32.totalorder %s19, 0
      %p60 = por %p58, %p59
      %s62 = sadd.s32 %s61, 1
      %p65 = scmp.eq.s32.totalorder %s13, 1
      %p66 = scmp.ne.s32.totalorder %s61, %s63
      %p67 = scmp.eq.s32.totalorder %s13, 0
      %p68 = por %p66, %p67
      %p69 = scmp.ne.s32.totalorder %s61, %s63
      %p70 = scmp.eq.s32.totalorder %s18, 1
      %p71 = por %p69, %p70
      %p72 = scmp.ne.s32.totalorder %s63, %s64
      %p73 = scmp.eq.s32.totalorder %s18, 0
      %p74 = por %p72, %p73
      %p75 = scmp.ne.s32.totalorder %s63, %s64
      %p76 = scmp.eq.s32.totalorder %s19, 1
      %p77 = por %p75, %p76
      %p79 = scmp.ne.s32.totalorder %s64, %s78
      %p80 = scmp.eq.s32.totalorder %s19, 0
      %p81 = por %p79, %p80
      %s83 = sadd.s32 %s82, 1
      %p86 = scmp.eq.s32.totalorder %s13, 1
      %p87 = scmp.ne.s32.totalorder %s82, %s84
      %p88 = scmp.eq.s32.totalorder %s13, 0
      %p89 = por %p87, %p88
      %p90 = scmp.ne.s32.totalorder %s82, %s84
      %p91 = scmp.eq.s32.totalorder %s18, 1
      %p92 = por %p90, %p91
      %p93 = scmp.ne.s32.totalorder %s84, %s85
      %p94 = scmp.eq.s32.totalorder %s18, 0
      %p95 = por %p93, %p94
      %p96 = scmp.ne.s32.totalorder %s84, %s85
      %p97 = scmp.eq.s32.totalorder %s19, 1
      %p98 = por %p96, %p97
      %p100 = scmp.ne.s32.totalorder %s85, %s99
      %p101 = scmp.eq.s32.totalorder %s19, 0
      %p102 = por %p100, %p101
      %s104 = sadd.s32 %s103, 1
      %p107 = scmp.eq.s32.totalorder %s13, 1
      %p108 = scmp.ne.s32.totalorder %s103, %s105
      %p109 = scmp.eq.s32.totalorder %s13, 0
      %p110 = por %p108, %p109
      %p111 = scmp.ne.s32.totalorder %s103, %s105
      %p112 = scmp.eq.s32.totalorder %s18, 1
      %p113 = por %p111, %p112
      %p114 = scmp.ne.s32.totalorder %s105, %s106
      %p115 = scmp.eq.s32.totalorder %s18, 0
      %p116 = por %p114, %p115
      %p117 = scmp.ne.s32.totalorder %s105, %s106
      %p118 = scmp.eq.s32.totalorder %s19, 1
      %p119 = por %p117, %p118
      %p121 = scmp.ne.s32.totalorder %s106, %s120
      %p122 = scmp.eq.s32.totalorder %s19, 0
      %p123 = por %p121, %p122
      %s124 = ssub.s32 %s20, %s32
      %s125 = ssub.s32 %s21, %s28
      %s126 = sor.u32 %s124, %s125
      %p127 = scmp.eq.s32.totalorder %s126, 0
      %s129 = sadd.s32 %s128, 1
      %s130 = scalar_select %p127, %s128, %s129
      %p133 = pneg %p127
      %p134 = scmp.eq.s32.totalorder %s13, 1
      %p135 = por %p133, %p134
      %p136 = scmp.ne.s32.totalorder %s128, %s131
      %p137 = scmp.eq.s32.totalorder %s13, 0
      %p138 = por %p136, %p137
      %p139 = scmp.ne.s32.totalorder %s128, %s131
      %p140 = scmp.eq.s32.totalorder %s18, 1
      %p141 = por %p139, %p140
      %p142 = scmp.ne.s32.totalorder %s131, %s132
      %p143 = scmp.eq.s32.totalorder %s18, 0
      %p144 = por %p142, %p143
      %p145 = scmp.ne.s32.totalorder %s131, %s132
      %p146 = scmp.eq.s32.totalorder %s19, 1
      %p147 = por %p145, %p146
      %p149 = scmp.ne.s32.totalorder %s132, %s148
      %p150 = scmp.eq.s32.totalorder %s19, 0
      %p151 = por %p149, %p150
      %p152 = scmp.le.s32.totalorder 1, %s13
      %p153 = scmp.lt.s32.totalorder %s13, 3
      %p154 = pnand %p152, %p153
      %p155 = pneg %p154
      // Predicated region
      $region9: #{tpu_custom_call.1} parent=5 // pred_check
        _
      $region10: #{tpu_custom_call.1} parent=5 // pred_check_branch
        %157 = sbr.rel (%p154) target = $region12
      $region11: #{tpu_custom_call.1} parent=5 // pred_region
        %s158 = ssub.s32 %s13, 1
        // Predicated region
        $region13: #{tpu_custom_call.1} parent=11 // pred_check
          %p159 = pneg %p74
        $region14: #{tpu_custom_call.1} parent=11 // pred_check_branch
          %161 = sbr.rel (%p159) target = $region16
        $region15: #{tpu_custom_call.1} parent=11 // pred_region
          _
        $region16: #{tpu_custom_call.1} parent=11 // pred_fallthru
          _
        // Predicated region
        $region17: #{tpu_custom_call.1} parent=11 // pred_check
          %p162 = pneg %p95
        $region18: #{tpu_custom_call.1} parent=11 // pred_check_branch
          %164 = sbr.rel (%p162) target = $region20
        $region19: #{tpu_custom_call.1} parent=11 // pred_region
          _
        $region20: #{tpu_custom_call.1} parent=11 // pred_fallthru
          _
        // Predicated region
        $region21: #{tpu_custom_call.1} parent=11 // pred_check
          %p165 = pneg %p116
        $region22: #{tpu_custom_call.1} parent=11 // pred_check_branch
          %167 = sbr.rel (%p165) target = $region24
        $region23: #{tpu_custom_call.1} parent=11 // pred_region
          _
        $region24: #{tpu_custom_call.1} parent=11 // pred_fallthru
          _
      $region12: #{tpu_custom_call.1} parent=5 // pred_fallthru
        _
      %p168 = scmp.lt.s32.totalorder %s13, 2
      // Predicated region
      $region25: #{tpu_custom_call.1} parent=5 // pred_check
        %p169 = pneg %p168
      $region26: #{tpu_custom_call.1} parent=5 // pred_check_branch
        %171 = sbr.rel (%p169) target = $region28
      $region27: #{tpu_custom_call.1} parent=5 // pred_region
        // Predicated region
        $region29: #{tpu_custom_call.1} parent=27 // pred_check
          %p172 = pneg %p47
        $region30: #{tpu_custom_call.1} parent=27 // pred_check_branch
          %174 = sbr.rel (%p172) target = $region32
        $region31: #{tpu_custom_call.1} parent=27 // pred_region
          %s175 = smul.u32 4, %s21
          %p176 = scmp.lt.s32.totalorder %s20, 1
          %s177 = scalar_select %p176, %s20, 1
          %p178 = scmp.lt.s32.totalorder %s175, 3
          %s179 = scalar_select %p178, %s175, 3
          %s180 = smul.addr %s177, 4
          %s181 = sadd.s32 %s179, %s180
          %s182 = smul.addr %s181, 8
          %s183 = scalar_lea.vmem %s0, %s182
          %s184 = smul.u32 4, %s21
        $region32: #{tpu_custom_call.1} parent=27 // pred_fallthru
          _
      $region28: #{tpu_custom_call.1} parent=5 // pred_fallthru
        _
      %p185 = scmp.le.s32.totalorder 1, %s13
      %p186 = scmp.lt.s32.totalorder %s13, 3
      %p187 = pnand %p185, %p186
      %p188 = pneg %p187
      // Predicated region
      $region33: #{tpu_custom_call.1} parent=5 // pred_check
        _
      $region34: #{tpu_custom_call.1} parent=5 // pred_check_branch
        %190 = sbr.rel (%p187) target = $region36
      $region35: #{tpu_custom_call.1} parent=5 // pred_region
        %s191 = ssub.s32 %s13, 1
        %s192 = smul.u32 4, %s23
        %p193 = scmp.lt.s32.totalorder %s22, 1
        %s194 = scalar_select %p193, %s22, 1
        %p195 = scmp.lt.s32.totalorder %s192, 3
        %s196 = scalar_select %p195, %s192, 3
        %s197 = smul.addr %s194, 4
        %s198 = sadd.s32 %s196, %s197
        %s199 = smul.addr %s198, 8
        %s200 = scalar_lea.vmem %s0, %s199
        %p201 = pneg %p53
        %p202 = pneg %p50
        %p203 = pneg %p74
        %p204 = pneg %p71
        %p205 = pneg %p95
        %p206 = pneg %p92
        %p207 = pneg %p116
        %p208 = pneg %p113
        %p209 = pneg %p144
        %p210 = pneg %p141
        %s211 = sand.u32 %s131, 1
        %s212 = scalar_lea.sflag [#allocation3], %s211
        %s213 = sand.u32 %s131, 1
        %s214 = smul.addr %s213, 32
        %s215 = scalar_lea.vmem [#allocation2], %s214
        %s216 = smul.u32 4, %s23
        %p217 = scmp.lt.s32.totalorder %s22, 1
        %s218 = scalar_select %p217, %s22, 1
        %p219 = scmp.lt.s32.totalorder %s216, 3
        %s220 = scalar_select %p219, %s216, 3
        %s221 = smul.addr %s218, 4
        %s222 = sadd.s32 %s220, %s221
        %s223 = smul.addr %s222, 8
        %s224 = scalar_lea.vmem %s0, %s223
        %s225 = smul.u32 4, %s23
        %v226 = vld [vmem:[%s224] sm:$0xff]
        %v227 = vld [vmem:[%s224 + $0x8] sm:$0xff]
        %v228 = vld [vmem:[%s224 + $0x10] sm:$0xff]
        %v229 = vld [vmem:[%s224 + $0x18] sm:$0xff]
        %v230 = vld [vmem:[%s1] sm:$0xff]
        %v231 = vld [vmem:[%s1 + $0x8] sm:$0xff]
        %v232 = vld [vmem:[%s1 + $0x10] sm:$0xff]
        %v233 = vld [vmem:[%s1 + $0x18] sm:$0xff]
        %v234 = vld [vmem:[%s1 + $0x20] sm:$0xff]
        %v235 = vld [vmem:[%s1 + $0x28] sm:$0xff]
        %v236 = vld [vmem:[%s1 + $0x30] sm:$0xff]
        %v237 = vld [vmem:[%s1 + $0x38] sm:$0xff]
        %v238 = vld [vmem:[%s1 + $0x40] sm:$0xff]
        %v239 = vld [vmem:[%s1 + $0x48] sm:$0xff]
        %v240 = vld [vmem:[%s1 + $0x50] sm:$0xff]
        %v241 = vld [vmem:[%s1 + $0x58] sm:$0xff]
        %v242 = vld [vmem:[%s1 + $0x60] sm:$0xff]
        %v243 = vld [vmem:[%s1 + $0x68] sm:$0xff]
        %v244 = vld [vmem:[%s1 + $0x70] sm:$0xff]
        %v245 = vld [vmem:[%s1 + $0x78] sm:$0xff]
        %246 = vmatprep.subr.mxu0 0.0
        %247 = vmatpush1.msra.mxu0 %v245
        %248 = vmatprep.subr.mxu0 0.0
        %249 = vmatpush1.msra.mxu0 %v244
        %250 = vmatprep.subr.mxu0 0.0
        %251 = vmatpush1.msra.mxu0 %v243
        %252 = vmatprep.subr.mxu0 0.0
        %253 = vmatpush1.msra.mxu0 %v242
        %254 = vmatprep.subr.mxu0 0.0
        %255 = vmatpush1.msra.mxu0 %v241
        %256 = vmatprep.subr.mxu0 0.0
        %257 = vmatpush1.msra.mxu0 %v240
        %258 = vmatprep.subr.mxu0 0.0
        %259 = vmatpush1.msra.mxu0 %v239
        %260 = vmatprep.subr.mxu0 0.0
        %261 = vmatpush1.msra.mxu0 %v238
        %262 = vmatprep.subr.mxu0 0.0
        %263 = vmatpush1.msra.mxu0 %v237
        %264 = vmatprep.subr.mxu0 0.0
        %265 = vmatpush1.msra.mxu0 %v236
        %266 = vmatprep.subr.mxu0 0.0
        %267 = vmatpush1.msra.mxu0 %v235
        %268 = vmatprep.subr.mxu0 0.0
        %269 = vmatpush1.msra.mxu0 %v234
        %270 = vmatprep.subr.mxu0 0.0
        %271 = vmatpush1.msra.mxu0 %v233
        %272 = vmatprep.subr.mxu0 0.0
        %273 = vmatpush1.msra.mxu0 %v232
        %274 = vmatprep.subr.mxu0 0.0
        %275 = vmatpush1.msra.mxu0 %v231
        %276 = vmatprep.subr.mxu0 0.0
        %277 = vmatpush1.msra.mxu0 %v230
        %278 = vmatprep.subr.mxu0 0.0
        %279 = vmatpush2.msra.mxu0 0.0
        %280 = vmatprep.subr.mxu0 0.0
        %281 = vmatpush2.msra.mxu0 0.0
        %282 = vmatprep.subr.mxu0 0.0
        %283 = vmatpush2.msra.mxu0 0.0
        %284 = vmatprep.subr.mxu0 0.0
        %285 = vmatpush2.msra.mxu0 0.0
        %286 = vmatprep.subr.mxu0 0.0
        %287 = vmatpush2.msra.mxu0 0.0
        %288 = vmatprep.subr.mxu0 0.0
        %289 = vmatpush2.msra.mxu0 0.0
        %290 = vmatprep.subr.mxu0 0.0
        %291 = vmatpush2.msra.mxu0 0.0
        %292 = vmatprep.subr.mxu0 0.0
        %293 = vmatpush2.msra.mxu0 0.0
        %294 = vmatprep.subr.mxu0 0.0
        %295 = vmatpush2.msra.mxu0 0.0
        %296 = vmatprep.subr.mxu0 0.0
        %297 = vmatpush2.msra.mxu0 0.0
        %298 = vmatprep.subr.mxu0 0.0
        %299 = vmatpush2.msra.mxu0 0.0
        %300 = vmatprep.subr.mxu0 0.0
        %301 = vmatpush2.msra.mxu0 0.0
        %302 = vmatprep.subr.mxu0 0.0
        %303 = vmatpush2.msra.mxu0 0.0
        %304 = vmatprep.subr.mxu0 0.0
        %305 = vmatpush2.msra.mxu0 0.0
        %306 = vmatprep.subr.mxu0 0.0
        %307 = vmatpush2.msra.mxu0 0.0
        %308 = vmatprep.subr.mxu0 0.0
        %309 = vmatpush2.msra.mxu0 0.0
        %310 = vmatprep.mubr.f32.mxu0 0.0
        %311 = vmatmul.mubr.f32.gmra.mxu0 %v226
        %v312 = vpop.f32.mrf.mxu0
        %v313 = vadd.f32 0.0, %v312
        %v314 = vpop.f32.mrf.mxu0
        %315 = vmatprep.mubr.f32.mxu0 0.0
        %316 = vmatmul.mubr.f32.gmra.mxu0 %v227
        %v317 = vpop.f32.mrf.mxu0
        %v318 = vadd.f32 0.0, %v317
        %v319 = vpop.f32.mrf.mxu0
        %320 = vmatprep.mubr.f32.mxu0 0.0
        %321 = vmatmul.mubr.f32.gmra.mxu0 %v228
        %v322 = vpop.f32.mrf.mxu0
        %v323 = vadd.f32 0.0, %v322
        %v324 = vpop.f32.mrf.mxu0
        %325 = vmatprep.mubr.f32.mxu0 0.0
        %326 = vmatmul.mubr.f32.gmra.mxu0 %v229
        %v327 = vpop.f32.mrf.mxu0
        %v328 = vadd.f32 0.0, %v327
        %v329 = vpop.f32.mrf.mxu0
        %330 = vdwg.mxu0
        %331 = vmatprep.subr.mxu0 0.0
        %332 = vmatpush1.msra.mxu0 1.0
        %333 = vmatprep.subr.mxu0 0.0
        %334 = vmatpush1.msra.mxu0 1.0
        %335 = vmatprep.subr.mxu0 0.0
        %336 = vmatpush1.msra.mxu0 1.0
        %337 = vmatprep.subr.mxu0 0.0
        %338 = vmatpush1.msra.mxu0 1.0
        %339 = vmatprep.subr.mxu0 0.0
        %340 = vmatpush1.msra.mxu0 1.0
        %341 = vmatprep.subr.mxu0 0.0
        %342 = vmatpush1.msra.mxu0 1.0
        %343 = vmatprep.subr.mxu0 0.0
        %344 = vmatpush1.msra.mxu0 1.0
        %345 = vmatprep.subr.mxu0 0.0
        %346 = vmatpush1.msra.mxu0 1.0
        %347 = vmatprep.subr.mxu0 0.0
        %348 = vmatpush1.msra.mxu0 1.0
        %349 = vmatprep.subr.mxu0 0.0
        %350 = vmatpush1.msra.mxu0 1.0
        %351 = vmatprep.subr.mxu0 0.0
        %352 = vmatpush1.msra.mxu0 1.0
        %353 = vmatprep.subr.mxu0 0.0
        %354 = vmatpush1.msra.mxu0 1.0
        %355 = vmatprep.subr.mxu0 0.0
        %356 = vmatpush1.msra.mxu0 1.0
        %357 = vmatprep.subr.mxu0 0.0
        %358 = vmatpush1.msra.mxu0 1.0
        %359 = vmatprep.subr.mxu0 0.0
        %360 = vmatpush1.msra.mxu0 1.0
        %361 = vmatprep.subr.mxu0 0.0
        %362 = vmatpush1.msra.mxu0 1.0
        %363 = vmatprep.subr.mxu0 0.0
        %364 = vmatpush2.msra.mxu0 0.0
        %365 = vmatprep.subr.mxu0 0.0
        %366 = vmatpush2.msra.mxu0 0.0
        %367 = vmatprep.subr.mxu0 0.0
        %368 = vmatpush2.msra.mxu0 0.0
        %369 = vmatprep.subr.mxu0 0.0
        %370 = vmatpush2.msra.mxu0 0.0
        %371 = vmatprep.subr.mxu0 0.0
        %372 = vmatpush2.msra.mxu0 0.0
        %373 = vmatprep.subr.mxu0 0.0
        %374 = vmatpush2.msra.mxu0 0.0
        %375 = vmatprep.subr.mxu0 0.0
        %376 = vmatpush2.msra.mxu0 0.0
        %377 = vmatprep.subr.mxu0 0.0
        %378 = vmatpush2.msra.mxu0 0.0
        %379 = vmatprep.subr.mxu0 0.0
        %380 = vmatpush2.msra.mxu0 0.0
        %381 = vmatprep.subr.mxu0 0.0
        %382 = vmatpush2.msra.mxu0 0.0
        %383 = vmatprep.subr.mxu0 0.0
        %384 = vmatpush2.msra.mxu0 0.0
        %385 = vmatprep.subr.mxu0 0.0
        %386 = vmatpush2.msra.mxu0 0.0
        %387 = vmatprep.subr.mxu0 0.0
        %388 = vmatpush2.msra.mxu0 0.0
        %389 = vmatprep.subr.mxu0 0.0
        %390 = vmatpush2.msra.mxu0 0.0
        %391 = vmatprep.subr.mxu0 0.0
        %392 = vmatpush2.msra.mxu0 0.0
        %393 = vmatprep.subr.mxu0 0.0
        %394 = vmatpush2.msra.mxu0 0.0
        %395 = vmatprep.mubr.f32.mxu0 0.0
        %396 = vmatmul.mubr.f32.gmra.mxu0 %v226
        %v397 = vpop.f32.mrf.mxu0
        %v398 = vadd.f32 0.0, %v397
        %v399 = vpop.f32.mrf.mxu0
        %400 = vmatprep.mubr.f32.mxu0 0.0
        %401 = vmatmul.mubr.f32.gmra.mxu0 %v227
        %v402 = vpop.f32.mrf.mxu0
        %v403 = vadd.f32 0.0, %v402
        %v404 = vpop.f32.mrf.mxu0
        %405 = vmatprep.mubr.f32.mxu0 0.0
        %406 = vmatmul.mubr.f32.gmra.mxu0 %v228
        %v407 = vpop.f32.mrf.mxu0
        %v408 = vadd.f32 0.0, %v407
        %v409 = vpop.f32.mrf.mxu0
        %410 = vmatprep.mubr.f32.mxu0 0.0
        %411 = vmatmul.mubr.f32.gmra.mxu0 %v229
        %v412 = vpop.f32.mrf.mxu0
        %v413 = vadd.f32 0.0, %v412
        %v414 = vpop.f32.mrf.mxu0
        %415 = vdwg.mxu0
        %v416 = vmul.f32 %v226, %v226
        %v417 = vmul.f32 %v227, %v227
        %v418 = vmul.f32 %v228, %v228
        %v419 = vmul.f32 %v229, %v229
        %420 = vmatprep.subr.mxu0 0.0
        %421 = vmatpush1.msra.mxu0 1.0
        %422 = vmatprep.subr.mxu0 0.0
        %423 = vmatpush1.msra.mxu0 1.0
        %424 = vmatprep.subr.mxu0 0.0
        %425 = vmatpush1.msra.mxu0 1.0
        %426 = vmatprep.subr.mxu0 0.0
        %427 = vmatpush1.msra.mxu0 1.0
        %428 = vmatprep.subr.mxu0 0.0
        %429 = vmatpush1.msra.mxu0 1.0
        %430 = vmatprep.subr.mxu0 0.0
        %431 = vmatpush1.msra.mxu0 1.0
        %432 = vmatprep.subr.mxu0 0.0
        %433 = vmatpush1.msra.mxu0 1.0
        %434 = vmatprep.subr.mxu0 0.0
        %435 = vmatpush1.msra.mxu0 1.0
        %436 = vmatprep.subr.mxu0 0.0
        %437 = vmatpush1.msra.mxu0 1.0
        %438 = vmatprep.subr.mxu0 0.0
        %439 = vmatpush1.msra.mxu0 1.0
        %440 = vmatprep.subr.mxu0 0.0
        %441 = vmatpush1.msra.mxu0 1.0
        %442 = vmatprep.subr.mxu0 0.0
        %443 = vmatpush1.msra.mxu0 1.0
        %444 = vmatprep.subr.mxu0 0.0
        %445 = vmatpush1.msra.mxu0 1.0
        %446 = vmatprep.subr.mxu0 0.0
        %447 = vmatpush1.msra.mxu0 1.0
        %448 = vmatprep.subr.mxu0 0.0
        %449 = vmatpush1.msra.mxu0 1.0
        %450 = vmatprep.subr.mxu0 0.0
        %451 = vmatpush1.msra.mxu0 1.0
        %452 = vmatprep.subr.mxu0 0.0
        %453 = vmatpush2.msra.mxu0 0.0
        %454 = vmatprep.subr.mxu0 0.0
        %455 = vmatpush2.msra.mxu0 0.0
        %456 = vmatprep.subr.mxu0 0.0
        %457 = vmatpush2.msra.mxu0 0.0
        %458 = vmatprep.subr.mxu0 0.0
        %459 = vmatpush2.msra.mxu0 0.0
        %460 = vmatprep.subr.mxu0 0.0
        %461 = vmatpush2.msra.mxu0 0.0
        %462 = vmatprep.subr.mxu0 0.0
        %463 = vmatpush2.msra.mxu0 0.0
        %464 = vmatprep.subr.mxu0 0.0
        %465 = vmatpush2.msra.mxu0 0.0
        %466 = vmatprep.subr.mxu0 0.0
        %467 = vmatpush2.msra.mxu0 0.0
        %468 = vmatprep.subr.mxu0 0.0
        %469 = vmatpush2.msra.mxu0 0.0
        %470 = vmatprep.subr.mxu0 0.0
        %471 = vmatpush2.msra.mxu0 0.0
        %472 = vmatprep.subr.mxu0 0.0
        %473 = vmatpush2.msra.mxu0 0.0
        %474 = vmatprep.subr.mxu0 0.0
        %475 = vmatpush2.msra.mxu0 0.0
        %476 = vmatprep.subr.mxu0 0.0
        %477 = vmatpush2.msra.mxu0 0.0
        %478 = vmatprep.subr.mxu0 0.0
        %479 = vmatpush2.msra.mxu0 0.0
        %480 = vmatprep.subr.mxu0 0.0
        %481 = vmatpush2.msra.mxu0 0.0
        %482 = vmatprep.subr.mxu0 0.0
        %483 = vmatpush2.msra.mxu0 0.0
        %484 = vmatprep.mubr.f32.mxu0 0.0
        %485 = vmatmul.mubr.f32.gmra.mxu0 %v416
        %v486 = vpop.f32.mrf.mxu0
        %v487 = vadd.f32 0.0, %v486
        %v488 = vpop.f32.mrf.mxu0
        %489 = vmatprep.mubr.f32.mxu0 0.0
        %490 = vmatmul.mubr.f32.gmra.mxu0 %v417
        %v491 = vpop.f32.mrf.mxu0
        %v492 = vadd.f32 0.0, %v491
        %v493 = vpop.f32.mrf.mxu0
        %494 = vmatprep.mubr.f32.mxu0 0.0
        %495 = vmatmul.mubr.f32.gmra.mxu0 %v418
        %v496 = vpop.f32.mrf.mxu0
        %v497 = vadd.f32 0.0, %v496
        %v498 = vpop.f32.mrf.mxu0
        %499 = vmatprep.mubr.f32.mxu0 0.0
        %500 = vmatmul.mubr.f32.gmra.mxu0 %v419
        %v501 = vpop.f32.mrf.mxu0
        %v502 = vadd.f32 0.0, %v501
        %v503 = vpop.f32.mrf.mxu0
        %504 = vdwg.mxu0
        %v505 = vmul.f32 %v398, 0.0078125
        %v506 = vmul.f32 %v403, 0.0078125
        %v507 = vmul.f32 %v408, 0.0078125
        %v508 = vmul.f32 %v413, 0.0078125
        %v509 = vmul.f32 %v487, 0.0078125
        %v510 = vmul.f32 %v492, 0.0078125
        %v511 = vmul.f32 %v497, 0.0078125
        %v512 = vmul.f32 %v502, 0.0078125
        %v513 = vmul.f32 %v505, %v505
        %v514 = vmul.f32 %v506, %v506
        %v515 = vmul.f32 %v507, %v507
        %v516 = vmul.f32 %v508, %v508
        %v517 = vsub.f32 %v509, %v513
        %v518 = vsub.f32 %v510, %v514
        %v519 = vsub.f32 %v511, %v515
        %v520 = vsub.f32 %v512, %v516
        %v521 = vmax.f32 %v517, 0.0
        %v522 = vmax.f32 %v518, 0.0
        %v523 = vmax.f32 %v519, 0.0
        %v524 = vmax.f32 %v520, 0.0
        %v525 = vadd.f32 %v521, 1e-05
        %v526 = vadd.f32 %v522, 1e-05
        %v527 = vadd.f32 %v523, 1e-05
        %v528 = vadd.f32 %v524, 1e-05
        %v529 = vrsqrt.pop %v525
        %v530 = vrsqrt.pop %v526
        %v531 = vrsqrt.pop %v527
        %v532 = vrsqrt.pop %v528
        %v533 = vld [vmem:[%s3] sm:$0x1]
        %535 = vset.pattern.permute.xlu0 0
        %536 = vperm.xlu0 %535, %v505
        %v537 = vpop.permute.xlu0 %536
        %540 = vset.pattern.permute.xlu0 0
        %541 = vperm.xlu0 %540, %v506
        %v542 = vpop.permute.xlu0 %541
        %545 = vset.pattern.permute.xlu0 0
        %546 = vperm.xlu0 %545, %v507
        %v547 = vpop.permute.xlu0 %546
        %550 = vset.pattern.permute.xlu0 0
        %551 = vperm.xlu0 %550, %v508
        %v552 = vpop.permute.xlu0 %551
        %v555 = vlaneseq
        %v556 = vshrl.u32 %v555, 7
        %v557 = vsub.s32 0, %v556
        %v558 = vrot.slane %v533, %v557
        %v560 = vmul.f32 %v537, %v558
        %v561 = vmul.f32 %v542, %v558
        %v562 = vmul.f32 %v547, %v558
        %v563 = vmul.f32 %v552, %v558
        %v564 = vsub.f32 %v313, %v560
        %v565 = vsub.f32 %v318, %v561
        %v566 = vsub.f32 %v323, %v562
        %v567 = vsub.f32 %v328, %v563
        %569 = vset.pattern.permute.xlu0 0
        %570 = vperm.xlu0 %569, %v529
        %v571 = vpop.permute.xlu0 %570
        %574 = vset.pattern.permute.xlu0 0
        %575 = vperm.xlu0 %574, %v530
        %v576 = vpop.permute.xlu0 %575
        %579 = vset.pattern.permute.xlu0 0
        %580 = vperm.xlu0 %579, %v531
        %v581 = vpop.permute.xlu0 %580
        %584 = vset.pattern.permute.xlu0 0
        %585 = vperm.xlu0 %584, %v532
        %v586 = vpop.permute.xlu0 %585
        %v588 = vmul.f32 %v564, %v571
        %v589 = vmul.f32 %v565, %v576
        %v590 = vmul.f32 %v566, %v581
        %v591 = vmul.f32 %v567, %v586
        %v592 = vld [vmem:[%s2] sm:$0x1]
        %v594 = vlaneseq
        %v595 = vshrl.u32 %v594, 7
        %v596 = vsub.s32 0, %v595
        %v597 = vrot.slane %v592, %v596
        %v599 = vadd.f32 %v588, %v597
        %v600 = vadd.f32 %v589, %v597
        %v601 = vadd.f32 %v590, %v597
        %v602 = vadd.f32 %v591, %v597
        %603 = vxpose.xlu0.b32.start [1/16] %v599, 128
        %604 = vxpose.xlu0.b32.cont [2/16] %v600, 128
        %605 = vxpose.xlu0.b32.cont [3/16] %v601, 128
        %606 = vxpose.xlu0.b32.cont [4/16] %v602, 128
        %607 = vxpose.xlu0.b32.cont [5/16] 0.0, 128
        %608 = vxpose.xlu0.b32.cont [6/16] 0.0, 128
        %609 = vxpose.xlu0.b32.cont [7/16] 0.0, 128
        %610 = vxpose.xlu0.b32.cont [8/16] 0.0, 128
        %611 = vxpose.xlu0.b32.cont [9/16] 0.0, 128
        %612 = vxpose.xlu0.b32.cont [10/16] 0.0, 128
        %613 = vxpose.xlu0.b32.cont [11/16] 0.0, 128
        %614 = vxpose.xlu0.b32.cont [12/16] 0.0, 128
        %615 = vxpose.xlu0.b32.cont [13/16] 0.0, 128
        %616 = vxpose.xlu0.b32.cont [14/16] 0.0, 128
        %617 = vxpose.xlu0.b32.cont [15/16] 0.0, 128
        %618 = vxpose.xlu0.b32.end [16/16] 0.0, 128
        %v619 = vpop.trf.xlu0
        %v620 = vpop.trf.xlu0
        %v621 = vpop.trf.xlu0
        %v622 = vpop.trf.xlu0
        %v623 = vpop.trf.xlu0
        %v624 = vpop.trf.xlu0
        %v625 = vpop.trf.xlu0
        %v626 = vpop.trf.xlu0
        %v627 = vpop.trf.xlu0
        %v628 = vpop.trf.xlu0
        %v629 = vpop.trf.xlu0
        %v630 = vpop.trf.xlu0
        %v631 = vpop.trf.xlu0
        %v632 = vpop.trf.xlu0
        %v633 = vpop.trf.xlu0
        %v634 = vpop.trf.xlu0
        %vm635 = vcmask 261120
        %636 = vst.msk [vmem:[%s215] sm:$0xff] %vm635, %v619
        %637 = vst.msk [vmem:[%s215 + $0x8] sm:$0xff] %vm635, %v620
        %638 = vst.msk [vmem:[%s215 + $0x10] sm:$0xff] %vm635, %v621
        %639 = vst.msk [vmem:[%s215 + $0x18] sm:$0xff] %vm635, %v622
        %s640 = sand.u32 %s131, 1
        %s641 = scalar_lea.sflag [#allocation3], %s640
        %s642 = sand.u32 %s131, 1
        %s643 = smul.addr %s642, 32
        %s644 = scalar_lea.vmem [#allocation2], %s643
        // Predicated region
        $region37: #{tpu_custom_call.1} parent=35 // pred_check
          %p645 = pneg %p141
        $region38: #{tpu_custom_call.1} parent=35 // pred_check_branch
          %647 = sbr.rel (%p645) target = $region40
        $region39: #{tpu_custom_call.1} parent=35 // pred_region
          %s649 = ssub.s32 512, 512
          %650 = vsyncadd %s641, %s649
          %s651 = smul.addr %s22, 4
          %s652 = sadd.s32 %s23, %s651
          %s653 = smul.addr %s652, 128
          %s654 = scalar_lea.hbm %s4, %s653
          %s655 = sshll.u32 %s644, 4
          %s656 = int_to_ptr.vmem [resolvable:$true] %s655
          %661 = dma.vmem_to_hbm [thread:$0]  %s656, 512, %s654, %s641, 128, 128, 8
        $region40: #{tpu_custom_call.1} parent=35 // pred_fallthru
          _
      $region36: #{tpu_custom_call.1} parent=5 // pred_fallthru
        _
      %p662 = scmp.le.s32.totalorder 2, %s13
      // Predicated region
      $region41: #{tpu_custom_call.1} parent=5 // pred_check
        %p663 = pneg %p662
      $region42: #{tpu_custom_call.1} parent=5 // pred_check_branch
        %665 = sbr.rel (%p663) target = $region44
      $region43: #{tpu_custom_call.1} parent=5 // pred_region
        %s666 = ssub.s32 %s13, 2
        // Predicated region
        $region45: #{tpu_custom_call.1} parent=43 // pred_check
          %p667 = pneg %p147
        $region46: #{tpu_custom_call.1} parent=43 // pred_check_branch
          %669 = sbr.rel (%p667) target = $region48
        $region47: #{tpu_custom_call.1} parent=43 // pred_region
          %s670 = sand.u32 %s132, 1
          %s671 = scalar_lea.sflag [#allocation3], %s670
          %s672 = sand.u32 %s132, 1
          %s673 = smul.addr %s672, 32
          %s674 = scalar_lea.vmem [#allocation2], %s673
          %675 = dma.done %s671, 512
        $region48: #{tpu_custom_call.1} parent=43 // pred_fallthru
          _
      $region44: #{tpu_custom_call.1} parent=5 // pred_fallthru
        _
    $region6: #{tpu_custom_call.1} parent=1 // loop_footer
      %s17 = sadd.s32 1, %s13
    $region7: #{tpu_custom_call.1} parent=1 // loop_footer_branch
      %12 = sbr.rel target = $region3
    $region8: #{tpu_custom_call.1} parent=1 // loop_exit
      _
    %676 = vsyncpa [#allocation3], 1
    %s677 = scalar_lea.sflag [#allocation3], 1
    %678 = vsyncpa %s677, 1

</llo_original>
